<compile_context>
chip_gen: v7x
topology: tpu7x:2x2x1
jax: 0.10.0
libtpu: 0.0.40
codegen_flags: <defaults>
</compile_context>

<pallas_src>
import functools

import jax
import jax.numpy as jnp
from jax.experimental import pallas as pl
from jax.experimental.pallas import tpu as pltpu


def _round_up(x, m):
    return ((x + m - 1) // m) * m


def _plan_tiles(n, d, max_tile_n=1024, max_tile_d=512):
    tile_n = min(max_tile_n, _round_up(n, 8))
    tile_d = min(max_tile_d, _round_up(d, 128))
    n_pad = _round_up(n, tile_n)
    d_pad = _round_up(d, tile_d)
    return tile_n, tile_d, n_pad, d_pad


def _pad2d(x, n_pad, d_pad):
    n, d = x.shape
    if (n_pad, d_pad) == (n, d):
        return x
    return jnp.pad(x, ((0, n_pad - n), (0, d_pad - d)))


# ---------------------------------------------------------------------------
# fit kernel: accumulate per-column sum / sum-of-squares over row tiles,
# finalize mean and scale = sqrt(biased var) on the last reduction step.
# Grid = (D_blocks, N_blocks); N (reduction) axis is last / "arbitrary".
# ---------------------------------------------------------------------------
def _fit_kernel(x_ref, mean_ref, scale_ref, sum_sc, sumsq_sc, *, total_rows):
    i = pl.program_id(1)  # row (reduction) axis

    @pl.when(i == 0)
    def _():
        sum_sc[...] = jnp.zeros_like(sum_sc)
        sumsq_sc[...] = jnp.zeros_like(sumsq_sc)

    x = x_ref[...].astype(jnp.float32)
    tn, td = x.shape
    # Split off the sublane axis so the per-step accumulation is purely
    # elementwise (VPU); the cross-sublane reduce is deferred to finalize.
    x3 = x.reshape(tn // 8, 8, td)
    sum_sc[...] += jnp.sum(x3, axis=0)
    sumsq_sc[...] += jnp.sum(x3 * x3, axis=0)

    @pl.when(i == pl.num_programs(1) - 1)
    def _():
        inv_n = 1.0 / float(total_rows)
        total = jnp.sum(sum_sc[...], axis=0, keepdims=True)      # single 8->1 XLU reduce
        total_sq = jnp.sum(sumsq_sc[...], axis=0, keepdims=True)
        mean = total * inv_n
        # biased variance (unbiased=False): E[x^2] - mean^2, clamped at 0
        var = jnp.maximum(total_sq * inv_n - mean * mean, 0.0)
        mean_ref[...] = mean.astype(mean_ref.dtype)
        scale_ref[...] = jnp.sqrt(var).astype(scale_ref.dtype)


def _fit_padded(xp, total_rows, tile_n, tile_d):
    n_pad, d_pad = xp.shape
    kernel = functools.partial(_fit_kernel, total_rows=total_rows)
    return pl.pallas_call(
        kernel,
        out_shape=(
            jax.ShapeDtypeStruct((1, d_pad), jnp.float32),
            jax.ShapeDtypeStruct((1, d_pad), jnp.float32),
        ),
        grid_spec=pltpu.PrefetchScalarGridSpec(
            num_scalar_prefetch=0,
            grid=(d_pad // tile_d, n_pad // tile_n),
            in_specs=[pl.BlockSpec((tile_n, tile_d), lambda j, i: (i, j))],
            out_specs=[
                pl.BlockSpec((1, tile_d), lambda j, i: (0, j)),
                pl.BlockSpec((1, tile_d), lambda j, i: (0, j)),
            ],
            scratch_shapes=[
                pltpu.VMEM((8, tile_d), jnp.float32),
                pltpu.VMEM((8, tile_d), jnp.float32),
            ],
        ),
        compiler_params=pltpu.CompilerParams(
            dimension_semantics=("parallel", "arbitrary"),
            vmem_limit_bytes=32 * 1024 * 1024,
        ),
    )(xp)


# ---------------------------------------------------------------------------
# forward kernel: (x - mean) * (1/scale); reciprocal computed once per
# (1, tile_d) row, broadcast over the row tile.
# ---------------------------------------------------------------------------
def _normalize_kernel(x_ref, mean_ref, scale_ref, o_ref):
    m = mean_ref[...].astype(jnp.float32)
    inv_s = 1.0 / scale_ref[...].astype(jnp.float32)   # (1, tile_d): far cheaper than per-element divide
    x = x_ref[...].astype(jnp.float32)
    o_ref[...] = ((x - m) * inv_s).astype(o_ref.dtype)


def _normalize_padded(xp, mean_p, scale_p, tile_n, tile_d, out_dtype):
    n_pad, d_pad = xp.shape
    return pl.pallas_call(
        _normalize_kernel,
        out_shape=jax.ShapeDtypeStruct((n_pad, d_pad), out_dtype),
        grid_spec=pltpu.PrefetchScalarGridSpec(
            num_scalar_prefetch=0,
            # D outer so the (1, tile_d) mean/scale blocks stay resident across
            # all row tiles of a column strip (fetched once per j).
            grid=(d_pad // tile_d, n_pad // tile_n),
            in_specs=[
                pl.BlockSpec((tile_n, tile_d), lambda j, i: (i, j)),
                pl.BlockSpec((1, tile_d), lambda j, i: (0, j)),
                pl.BlockSpec((1, tile_d), lambda j, i: (0, j)),
            ],
            out_specs=pl.BlockSpec((tile_n, tile_d), lambda j, i: (i, j)),
        ),
        compiler_params=pltpu.CompilerParams(
            dimension_semantics=("parallel", "parallel"),
            vmem_limit_bytes=32 * 1024 * 1024,
        ),
    )(xp, mean_p, scale_p)


# ---------------------------------------------------------------------------
# Public wrappers (pad -> kernel -> slice)
# ---------------------------------------------------------------------------
def pallas_fit(x, *, max_tile_n=1024, max_tile_d=512):
    """Returns (mean, scale), each shape (D,), matching RowPreprocessor.fit."""
    n, d = x.shape
    tile_n, tile_d, n_pad, d_pad = _plan_tiles(n, d, max_tile_n, max_tile_d)
    xp = _pad2d(x, n_pad, d_pad)
    mean_p, scale_p = _fit_padded(xp, n, tile_n, tile_d)
    return mean_p[0, :d].astype(x.dtype), scale_p[0, :d].astype(x.dtype)


def pallas_normalize(x, mean, scale, *, max_tile_n=1024, max_tile_d=512):
    n, d = x.shape
    tile_n, tile_d, n_pad, d_pad = _plan_tiles(n, d, max_tile_n, max_tile_d)
    xp = _pad2d(x, n_pad, d_pad)
    # Pad mean with 0 and scale with 1 so padded columns stay finite.
    mean_p = jnp.pad(mean.reshape(1, d).astype(jnp.float32), ((0, 0), (0, d_pad - d)))
    scale_p = jnp.pad(scale.reshape(1, d).astype(jnp.float32), ((0, 0), (0, d_pad - d)),
                      constant_values=1.0)
    out = _normalize_padded(xp, mean_p, scale_p, tile_n, tile_d, x.dtype)
    return out[:n, :d]


def pallas_fit_transform(x, *, max_tile_n=1024, max_tile_d=512):
    """Fit + normalize, padding x only once. Returns (mean, scale, normalized)."""
    n, d = x.shape
    tile_n, tile_d, n_pad, d_pad = _plan_tiles(n, d, max_tile_n, max_tile_d)
    xp = _pad2d(x, n_pad, d_pad)
    mean_p, scale_p = _fit_padded(xp, n, tile_n, tile_d)
    # Padded columns have scale == 0; force them to 1 so the (sliced-off)
    # padded region stays finite.
    if d_pad != d:
        col = jax.lax.broadcasted_iota(jnp.int32, (1, d_pad), 1)
        scale_norm = jnp.where(col < d, scale_p, 1.0)
    else:
        scale_norm = scale_p
    out = _normalize_padded(xp, mean_p, scale_norm, tile_n, tile_d, x.dtype)
    mean = mean_p[0, :d].astype(x.dtype)
    scale = scale_p[0, :d].astype(x.dtype)
    return mean, scale, out[:n, :d]


# ---------------------------------------------------------------------------
# Python wrapper mirroring RowPreprocessor semantics.
# ---------------------------------------------------------------------------
class RowPreprocessorPallas:
    def __init__(self):
        self.mean = None
        self.var = None
        self.scale = None
        self.count = 0
        self.fitted = False

    def reset(self):
        self.mean = None
        self.var = None
        self.scale = None
        self.count = 0.0
        self.fitted = False

    def fit(self, x):
        self.mean, self.scale = pallas_fit(x)
        self.var = self.scale * self.scale
        self.fitted = True  # mirrors fitted-buffer / state-dict behavior

    def __call__(self, x):
        if not self.fitted:
            return x  # forward returns input unchanged when not fitted
        return pallas_normalize(x, self.mean, self.scale)

    def fit_transform(self, x):
        self.mean, self.scale, y = pallas_fit_transform(x)
        self.var = self.scale * self.scale
        self.fitted = True
        return y

    # TODO(synk): partial_fit (streaming Welford-style update) and
    # _load_from_state_dict are host-side bookkeeping paths, not kernel hot
    # paths — not ported to Pallas.


def _reference(x):
    mean = x.mean(axis=0)
    scale = jnp.sqrt(((x - mean) ** 2).mean(axis=0))
    return mean, scale, (x - mean) / scale


if __name__ == "__main__":
    key = jax.random.PRNGKey(0)

    # --- case 1: small, lane-aligned shape ---
    N, D = 16, 128
    x = jax.random.normal(key, (N, D), dtype=jnp.float32) * 3.0 + 1.5

    pre = RowPreprocessorPallas()

    # not-fitted branch: identity
    y0 = pre(x)
    jax.block_until_ready(y0)
    assert jnp.allclose(y0, x)

    y = pre.fit_transform(x)
    jax.block_until_ready(y)

    ref_mean, ref_scale, ref = _reference(x)
    assert jnp.allclose(pre.mean, ref_mean, atol=1e-4, rtol=1e-4)
    assert jnp.allclose(pre.scale, ref_scale, atol=1e-4, rtol=1e-4)
    assert jnp.allclose(y, ref, atol=1e-4, rtol=1e-4)

    # separate fit + forward path
    pre1 = RowPreprocessorPallas()
    pre1.fit(x)
    y1 = pre1(x)
    jax.block_until_ready(y1)
    assert jnp.allclose(y1, ref, atol=1e-4, rtol=1e-4)

    # --- case 2: ragged shape (exercises padding / masked tiles) ---
    N2, D2 = 37, 200
    x2 = jax.random.normal(jax.random.PRNGKey(1), (N2, D2), dtype=jnp.float32) * 0.7 - 2.0
    pre2 = RowPreprocessorPallas()
    y2 = pre2.fit_transform(x2)
    jax.block_until_ready(y2)

    ref_mean2, ref_scale2, ref2 = _reference(x2)
    assert y2.shape == (N2, D2)
    assert jnp.allclose(pre2.mean, ref_mean2, atol=1e-4, rtol=1e-4)
    assert jnp.allclose(pre2.scale, ref_scale2, atol=1e-4, rtol=1e-4)
    assert jnp.allclose(y2, ref2, atol=1e-4, rtol=1e-4)

    print("KERNEL_OK")
</pallas_src>

<mosaic_0001>
module attributes {stable_mosaic.version = 11 : i64} {
  func.func @_fit_kernel(%arg0: i32, %arg1: i32, %arg2: memref<16x128xf32, #tpu.memory_space<vmem>>, %arg3: memref<1x128xf32, #tpu.memory_space<vmem>>, %arg4: memref<1x128xf32, #tpu.memory_space<vmem>>, %arg5: memref<8x128xf32, #tpu.memory_space<vmem>>, %arg6: memref<8x128xf32, #tpu.memory_space<vmem>>) attributes {dimension_semantics = [#tpu.dimension_semantics<parallel>, #tpu.dimension_semantics<arbitrary>], iteration_bounds = array<i64: 1, 1>, scalar_prefetch = 0 : i64, scratch_operands = 2 : i64, tpu.core_type = #tpu.core_type<tc>, window_params = [{transform_indices = @transform_0, window_bounds = array<i64: 16, 128>}, {transform_indices = @transform_1, window_bounds = array<i64: 1, 128>}, {transform_indices = @transform_2, window_bounds = array<i64: 1, 128>}]} {
    %c0_i32 = arith.constant 0 : i32
    %0 = arith.cmpi eq, %arg1, %c0_i32 : i32
    %1 = arith.extui %0 : i1 to i32
    %c0_i32_0 = arith.constant 0 : i32
    %2 = arith.cmpi ne, %1, %c0_i32_0 : i32
    scf.if %2 {
      %cst_13 = arith.constant 0.000000e+00 : f32
      %17 = vector.broadcast %cst_13 : f32 to vector<8x128xf32>
      %c0_14 = arith.constant 0 : index
      %c0_15 = arith.constant 0 : index
      %18 = vector.load %arg5[%c0_14, %c0_15] : memref<8x128xf32, #tpu.memory_space<vmem>>, vector<8x128xf32>
      tpu.vector_store %arg5[%c0_14, %c0_15], %17 {strides = array<i32>} : memref<8x128xf32, #tpu.memory_space<vmem>>, vector<8x128xf32>,
      %cst_16 = arith.constant 0.000000e+00 : f32
      %19 = vector.broadcast %cst_16 : f32 to vector<8x128xf32>
      %c0_17 = arith.constant 0 : index
      %c0_18 = arith.constant 0 : index
      %20 = vector.load %arg6[%c0_17, %c0_18] : memref<8x128xf32, #tpu.memory_space<vmem>>, vector<8x128xf32>
      tpu.vector_store %arg6[%c0_17, %c0_18], %19 {strides = array<i32>} : memref<8x128xf32, #tpu.memory_space<vmem>>, vector<8x128xf32>,
    } else {
    }
    %c0 = arith.constant 0 : index
    %c0_1 = arith.constant 0 : index
    %3 = vector.load %arg2[%c0, %c0_1] : memref<16x128xf32, #tpu.memory_space<vmem>>, vector<16x128xf32>
    %4 = vector.shape_cast %3 : vector<16x128xf32> to vector<2x8x128xf32>
    %c0_2 = arith.constant 0 : index
    %c0_3 = arith.constant 0 : index
    %5 = vector.load %arg5[%c0_2, %c0_3] : memref<8x128xf32, #tpu.memory_space<vmem>>, vector<8x128xf32>
    %cst = arith.constant dense<0.000000e+00> : vector<8x128xf32>
    %6 = vector.multi_reduction <add>, %4, %cst [0] : vector<2x8x128xf32> to vector<8x128xf32>
    %7 = arith.addf %5, %6 : vector<8x128xf32>
    %c0_4 = arith.constant 0 : index
    %c0_5 = arith.constant 0 : index
    %8 = vector.load %arg5[%c0_4, %c0_5] : memref<8x128xf32, #tpu.memory_space<vmem>>, vector<8x128xf32>
    tpu.vector_store %arg5[%c0_4, %c0_5], %7 {strides = array<i32>} : memref<8x128xf32, #tpu.memory_space<vmem>>, vector<8x128xf32>,
    %c0_6 = arith.constant 0 : index
    %c0_7 = arith.constant 0 : index
    %9 = vector.load %arg6[%c0_6, %c0_7] : memref<8x128xf32, #tpu.memory_space<vmem>>, vector<8x128xf32>
    %10 = arith.mulf %4, %4 : vector<2x8x128xf32>
    %cst_8 = arith.constant dense<0.000000e+00> : vector<8x128xf32>
    %11 = vector.multi_reduction <add>, %10, %cst_8 [0] : vector<2x8x128xf32> to vector<8x128xf32>
    %12 = arith.addf %9, %11 : vector<8x128xf32>
    %c0_9 = arith.constant 0 : index
    %c0_10 = arith.constant 0 : index
    %13 = vector.load %arg6[%c0_9, %c0_10] : memref<8x128xf32, #tpu.memory_space<vmem>>, vector<8x128xf32>
    tpu.vector_store %arg6[%c0_9, %c0_10], %12 {strides = array<i32>} : memref<8x128xf32, #tpu.memory_space<vmem>>, vector<8x128xf32>,
    %c0_i32_11 = arith.constant 0 : i32
    %14 = arith.cmpi eq, %arg1, %c0_i32_11 : i32
    %15 = arith.extui %14 : i1 to i32
    %c0_i32_12 = arith.constant 0 : i32
    %16 = arith.cmpi ne, %15, %c0_i32_12 : i32
    scf.if %16 {
      %c0_13 = arith.constant 0 : index
      %c0_14 = arith.constant 0 : index
      %17 = vector.load %arg5[%c0_13, %c0_14] : memref<8x128xf32, #tpu.memory_space<vmem>>, vector<8x128xf32>
      %cst_15 = arith.constant dense<0.000000e+00> : vector<128xf32>
      %18 = vector.multi_reduction <add>, %17, %cst_15 [0] : vector<8x128xf32> to vector<128xf32>
      %19 = vector.shape_cast %18 : vector<128xf32> to vector<1x128xf32>
      %c0_16 = arith.constant 0 : index
      %c0_17 = arith.constant 0 : index
      %20 = vector.load %arg6[%c0_16, %c0_17] : memref<8x128xf32, #tpu.memory_space<vmem>>, vector<8x128xf32>
      %cst_18 = arith.constant dense<0.000000e+00> : vector<128xf32>
      %21 = vector.multi_reduction <add>, %20, %cst_18 [0] : vector<8x128xf32> to vector<128xf32>
      %22 = vector.shape_cast %21 : vector<128xf32> to vector<1x128xf32>
      %cst_19 = arith.constant 6.250000e-02 : f32
      %23 = vector.broadcast %cst_19 : f32 to vector<1x128xf32>
      %24 = arith.mulf %19, %23 : vector<1x128xf32>
      %cst_20 = arith.constant 6.250000e-02 : f32
      %25 = vector.broadcast %cst_20 : f32 to vector<1x128xf32>
      %26 = arith.mulf %22, %25 : vector<1x128xf32>
      %27 = arith.mulf %24, %24 : vector<1x128xf32>
      %28 = arith.subf %26, %27 : vector<1x128xf32>
      %cst_21 = arith.constant 0.000000e+00 : f32
      %29 = vector.broadcast %cst_21 : f32 to vector<1x128xf32>
      %30 = arith.maximumf %28, %29 : vector<1x128xf32>
      %c0_22 = arith.constant 0 : index
      %c0_23 = arith.constant 0 : index
      %31 = vector.load %arg3[%c0_22, %c0_23] : memref<1x128xf32, #tpu.memory_space<vmem>>, vector<1x128xf32>
      tpu.vector_store %arg3[%c0_22, %c0_23], %24 {strides = array<i32>} : memref<1x128xf32, #tpu.memory_space<vmem>>, vector<1x128xf32>,
      %32 = math.sqrt %30 : vector<1x128xf32>
      %c0_24 = arith.constant 0 : index
      %c0_25 = arith.constant 0 : index
      %33 = vector.load %arg4[%c0_24, %c0_25] : memref<1x128xf32, #tpu.memory_space<vmem>>, vector<1x128xf32>
      tpu.vector_store %arg4[%c0_24, %c0_25], %32 {strides = array<i32>} : memref<1x128xf32, #tpu.memory_space<vmem>>, vector<1x128xf32>,
    } else {
    }
    return
  }
  func.func @transform_0(%arg0: i32, %arg1: i32) -> (i32, i32) {
    %c0_i32 = arith.constant 0 : i32
    return %arg1, %arg0 : i32, i32
  }
  func.func @transform_1(%arg0: i32, %arg1: i32) -> (i32, i32) {
    %c0_i32 = arith.constant 0 : i32
    %c0_i32_0 = arith.constant 0 : i32
    return %c0_i32, %arg0 : i32, i32
  }
  func.func @transform_2(%arg0: i32, %arg1: i32) -> (i32, i32) {
    %c0_i32 = arith.constant 0 : i32
    %c0_i32_0 = arith.constant 0 : i32
    return %c0_i32, %arg0 : i32, i32
  }
}

</mosaic_0001>

<llo_original>
// kernel: tpu_custom_call.1
$region0: #{tpu_custom_call.1}
  #allocation0 [shape = 'u32[]', space=smem, size = 0x4, offset = 0x4, fixed_abs, tag = 'smem constant byte address 0x4 - core index']
  #allocation1 [shape = 'u32[144,128]{1,0:T(1,128)}', space=vmem, size = 0x12000, scoped, tag = 'internal scratch']
  #allocation2 [shape = 'f32[8,128]{1,0:T(8,128)}', space=vmem, size = 0x1000, scoped, tag = 'scratch operand']
  #allocation3 [shape = 'f32[8,128]{1,0:T(8,128)}', space=vmem, size = 0x1000, scoped, tag = 'scratch operand']
  %s0 = inlined_call_operand.hbm [shape: f32[16,128], index: 0, kind: input, shape index: {}]
  %s1 = inlined_call_operand.hbm [shape: f32[1,128], index: 1, kind: output, shape index: {0}]
  %s2 = inlined_call_operand.hbm [shape: f32[1,128], index: 2, kind: output, shape index: {1}]
  %3 = xla_tuple %s1, %s2
  %s4 = sld [smem:[#allocation0]]
  $region34: #{tpu_custom_call.1} parent=0
    _
  %s6 = ssub.s32 1, %s4
  %s7 = scalar_select 0, %s6, %s4
  $region1: #{tpu_custom_call.1} parent=0
    #allocation4 [shape = 'u8[8192]{0}', space=vmem, size = 0x2000, scoped, tag = 'input window, operand 0, single buffered']
    #allocation5 [shape = 's32[1]{0}', space=sflag, size = 0x4, scoped, tag = 'scoped memory for tpu_custom_call.1']
    #allocation6 [shape = 's32[1]{0}', space=sflag, size = 0x4, scoped, tag = 'scoped memory for tpu_custom_call.1']
    #allocation7 [shape = 'u8[512]{0}', space=vmem, size = 0x400, scoped, tag = 'output window, operand 0, single buffered']
    #allocation8 [shape = 'u8[512]{0}', space=vmem, size = 0x400, scoped, tag = 'output window, operand 1, single buffered']
    #allocation9 [shape = 's32[1]{0}', space=sflag, size = 0x4, scoped, tag = 'scoped memory for tpu_custom_call.1']
    %8 = vsyncpa [#allocation5], 0
    %9 = vsyncpa [#allocation6], 0
    %10 = vsyncpa [#allocation9], 0
    // Predicated region
    $region2: #{tpu_custom_call.1} parent=1 // pred_check
      _
    $region3: #{tpu_custom_call.1} parent=1 // pred_check_branch
      %12 = sbr.rel (0) target = $region5
    $region4: #{tpu_custom_call.1} parent=1 // pred_region
      %s14 = ssub.s32 256, 256
      %15 = vsyncadd [#allocation5], %s14
      %s16 = sshll.u32 [#allocation4], 4
      %s17 = int_to_ptr.vmem [resolvable:$true] %s16
      %22 = dma.hbm_to_vmem [thread:$0]  %s0, 256, %s17, [#allocation5], 128, 128, 8
    $region5: #{tpu_custom_call.1} parent=1 // pred_fallthru
      _
    // Predicated region
    $region6: #{tpu_custom_call.1} parent=1 // pred_check
      _
    $region7: #{tpu_custom_call.1} parent=1 // pred_check_branch
      %24 = sbr.rel (0) target = $region9
    $region8: #{tpu_custom_call.1} parent=1 // pred_region
      %25 = dma.done [#allocation5], 256
    $region9: #{tpu_custom_call.1} parent=1 // pred_fallthru
      _
    %p26 = scmp.eq.s32.totalorder 0, 0
    // Predicated region
    $region10: #{tpu_custom_call.1} parent=1 // pred_check
      %p27 = pneg %p26
    $region11: #{tpu_custom_call.1} parent=1 // pred_check_branch
      %29 = sbr.rel (%p27) target = $region13
    $region12: #{tpu_custom_call.1} parent=1 // pred_region
      %30 = vst [vmem:[#allocation2] sm:$0xff] 0.0
      %31 = vst [vmem:[#allocation3] sm:$0xff] 0.0
    $region13: #{tpu_custom_call.1} parent=1 // pred_fallthru
      _
    %v32 = vld [vmem:[#allocation4] sm:$0xff]
    %v33 = vld [vmem:[#allocation4 + $0x8] sm:$0xff]
    %v34 = vld [vmem:[#allocation2] sm:$0xff]
    %v35 = vadd.f32 %v32, %v33
    %v36 = vadd.f32 %v34, %v35
    %37 = vst [vmem:[#allocation2] sm:$0xff] %v36
    %v38 = vld [vmem:[#allocation3] sm:$0xff]
    %v39 = vmul.f32 %v32, %v32
    %v40 = vmul.f32 %v33, %v33
    %v41 = vadd.f32 %v39, %v40
    %v42 = vadd.f32 %v38, %v41
    %43 = vst [vmem:[#allocation3] sm:$0xff] %v42
    // Predicated region
    $region14: #{tpu_custom_call.1} parent=1 // pred_check
      %p44 = pneg %p26
    $region15: #{tpu_custom_call.1} parent=1 // pred_check_branch
      %46 = sbr.rel (%p44) target = $region17
    $region16: #{tpu_custom_call.1} parent=1 // pred_region
      %v47 = vld [vmem:[#allocation2] sm:$0xff]
      %v48 = vrot.slane %v47, 4
      %v49 = vadd.f32 %v47, %v48
      %v50 = vrot.slane %v49, 2
      %v51 = vadd.f32 %v49, %v50
      %v52 = vrot.slane %v51, 1
      %v53 = vadd.f32 %v51, %v52
      %v54 = vld [vmem:[#allocation3] sm:$0xff]
      %v55 = vrot.slane %v54, 4
      %v56 = vadd.f32 %v54, %v55
      %v57 = vrot.slane %v56, 2
      %v58 = vadd.f32 %v56, %v57
      %v59 = vrot.slane %v58, 1
      %v60 = vadd.f32 %v58, %v59
      %v61 = vmul.f32 %v53, 0.0625
      %v62 = vmul.f32 %v60, 0.0625
      %v63 = vmul.f32 %v61, %v61
      %v64 = vsub.f32 %v62, %v63
      %v65 = vmax.f32 %v64, 0.0
      %66 = vst [vmem:[#allocation7] sm:$0x1] %v61
      %v67 = vrsqrt.pop %v65
      %v68 = vmul.f32 %v65, %v67
      %vm69 = vcmp.eq.f32.partialorder %v65, inf
      %v70 = vsel %vm69, %v65, %v68
      %vm71 = vcmp.eq.f32.partialorder %v65, 0.0
      %v72 = vand.u32 %v65, 2147483648
      %v73 = vsel %vm71, %v72, %v70
      %74 = vst [vmem:[#allocation8] sm:$0x1] %v73
    $region17: #{tpu_custom_call.1} parent=1 // pred_fallthru
      _
    // Predicated region
    $region18: #{tpu_custom_call.1} parent=1 // pred_check
      _
    $region19: #{tpu_custom_call.1} parent=1 // pred_check_branch
      %76 = sbr.rel (0) target = $region21
    $region20: #{tpu_custom_call.1} parent=1 // pred_region
      %s78 = ssub.s32 16, 16
      %79 = vsyncadd [#allocation6], %s78
      %s81 = sshll.u32 [#allocation7], 4
      %s82 = int_to_ptr.vmem [resolvable:$true] %s81
      %84 = dma.vmem_to_hbm [thread:$0]  %s82, 16, %s1, [#allocation6]
    $region21: #{tpu_custom_call.1} parent=1 // pred_fallthru
      _
    // Predicated region
    $region22: #{tpu_custom_call.1} parent=1 // pred_check
      _
    $region23: #{tpu_custom_call.1} parent=1 // pred_check_branch
      %86 = sbr.rel (0) target = $region25
    $region24: #{tpu_custom_call.1} parent=1 // pred_region
      %s88 = ssub.s32 16, 16
      %89 = vsyncadd [#allocation9], %s88
      %s91 = sshll.u32 [#allocation8], 4
      %s92 = int_to_ptr.vmem [resolvable:$true] %s91
      %94 = dma.vmem_to_hbm [thread:$0]  %s92, 16, %s2, [#allocation9]
    $region25: #{tpu_custom_call.1} parent=1 // pred_fallthru
      _
    // Predicated region
    $region26: #{tpu_custom_call.1} parent=1 // pred_check
      _
    $region27: #{tpu_custom_call.1} parent=1 // pred_check_branch
      %96 = sbr.rel (0) target = $region29
    $region28: #{tpu_custom_call.1} parent=1 // pred_region
      %97 = dma.done [#allocation6], 16
    $region29: #{tpu_custom_call.1} parent=1 // pred_fallthru
      _
    // Predicated region
    $region30: #{tpu_custom_call.1} parent=1 // pred_check
      _
    $region31: #{tpu_custom_call.1} parent=1 // pred_check_branch
      %99 = sbr.rel (0) target = $region33
    $region32: #{tpu_custom_call.1} parent=1 // pred_region
      %100 = dma.done [#allocation9], 16
    $region33: #{tpu_custom_call.1} parent=1 // pred_fallthru
      _
    %101 = vsyncpa [#allocation5], 1
    %102 = vsyncpa [#allocation6], 1
    %103 = vsyncpa [#allocation9], 1

</llo_original>
